<compile_context>
chip_gen: v6e
topology: v6e:2x2x1
jax: 0.10.0
libtpu: 0.0.40
codegen_flags: <defaults>
</compile_context>

<pallas_src>
import jax
import jax.numpy as jnp
from jax.experimental import pallas as pl
from jax.experimental.pallas import tpu as pltpu


def _scorer_kernel(x_ref, w_ref, b_ref, o_ref):
    # x_ref: (TB, H) VMEM tile (f32 or bf16), pipelined per grid step
    # w_ref: (1, H)  f32 VMEM, resident across the grid (constant index_map)
    # b_ref: (1,)    f32 SMEM scalar
    # o_ref: (TB, 1) f32 VMEM output tile
    h = x_ref.shape[-1]

    # Pick a lane-slab width for the chunked multiply-accumulate.
    slab = 0
    for cand in (512, 256, 128):
        if h > cand and h % cand == 0:
            slab = cand
            break

    if slab:
        # Explicit MAC over H-slabs: live temporary is (TB, slab) f32, not a
        # full (TB, H) product; one lane reduce at the end.
        acc = (x_ref[:, 0:slab].astype(jnp.float32)
               * w_ref[:, 0:slab].astype(jnp.float32))
        for c in range(1, h // slab):
            lo = c * slab
            acc = acc + (x_ref[:, lo:lo + slab].astype(jnp.float32)
                         * w_ref[:, lo:lo + slab].astype(jnp.float32))
        s = jnp.sum(acc, axis=-1, keepdims=True)                  # (TB, 1) f32
    else:
        s = jnp.sum(x_ref[...].astype(jnp.float32)
                    * w_ref[...].astype(jnp.float32),
                    axis=-1, keepdims=True)                        # (TB, 1) f32

    o_ref[...] = (s + b_ref[0]).astype(o_ref.dtype)


def _is_v7x():
    """Best-effort generation sniff; only used to opt into CORE_PARALLEL."""
    try:
        kind = jax.devices()[0].device_kind.lower()
    except Exception:
        return False
    return ("v7" in kind) or ("7x" in kind)


def sentence_scorer(features, weight, bias, *,
                    vmem_block_bytes=4 * 1024 * 1024,
                    xla_fallback_elems=128 * 128,
                    force_pallas=False):
    """Eval-mode forward of SentenceScorer: dropout(identity) -> Linear(H, 1).

    features: (B, H) f32 or bf16
    weight:   (1, H)       (torch nn.Linear weight layout)
    bias:     (1,)
    returns:  (B, 1) f32
    """
    B, H = features.shape
    weight = weight.reshape(1, H).astype(jnp.float32)
    bias = bias.reshape(1).astype(jnp.float32)
    out_dtype = jnp.float32

    # Narrow / tiny problems: each (8,128) vreg and DMA would be mostly lane
    # waste (H < 128) or dominated by launch overhead; let XLA do it.
    if (H < 128 or B * H < xla_fallback_elems) and not force_pallas:
        return (features.astype(jnp.float32) @ weight.T + bias).astype(out_dtype)

    x_bytes = jnp.dtype(features.dtype).itemsize

    # --- batch tile from a VMEM byte budget (2-8 MiB sweet spot; <=16 MiB so
    #     the double-buffered pair stays v7x-safe) ------------------------------
    budget = int(min(max(vmem_block_bytes, 1 << 20), 16 << 20))
    rows = budget // (H * x_bytes)
    rows = max(8, (rows // 8) * 8)          # (8,128) sublane constraint
    tb = B if B <= rows else rows           # full-dim block always legal
    grid = (pl.cdiv(B, tb),)                # ragged tail block masked by Pallas

    # --- explicit scoped-VMEM request, capped for v7x's 64 MiB physical ------
    footprint = 2 * tb * H * x_bytes + 2 * H * 4 + 2 * tb * 4
    vmem_limit = int(min(max(footprint + footprint // 2 + (2 << 20), 16 << 20),
                         40 << 20))

    # Only CORE_PARALLEL actually shards the grid across v7x's two TensorCores;
    # plain "parallel" is kept on single-TC generations.
    batch_sem = pltpu.CORE_PARALLEL if _is_v7x() else "parallel"

    cost = pl.CostEstimate(
        flops=2 * B * H,
        transcendentals=0,
        bytes_accessed=B * H * x_bytes + H * 4 + 4 + B * 4,
    )

    return pl.pallas_call(
        _scorer_kernel,
        out_shape=jax.ShapeDtypeStruct((B, 1), out_dtype),
        grid_spec=pltpu.PrefetchScalarGridSpec(
            num_scalar_prefetch=0,
            grid=grid,
            in_specs=[
                # batch-tiled activations, double-buffered by the pipeline
                pl.BlockSpec((tb, H), lambda i: (i, 0)),
                # weight: same block every step -> stays resident in VMEM
                pl.BlockSpec((1, H), lambda i: (0, 0)),
                # bias: scalar in SMEM
                pl.BlockSpec(memory_space=pltpu.MemorySpace.SMEM),
            ],
            out_specs=pl.BlockSpec((tb, 1), lambda i: (i, 0)),
        ),
        compiler_params=pltpu.CompilerParams(
            dimension_semantics=(batch_sem,),
            vmem_limit_bytes=vmem_limit,
        ),
        cost_estimate=cost,
    )(features, weight, bias)


def sentence_scorer_reference(features, weight, bias):
    """Plain-JAX reference."""
    return (features.astype(jnp.float32) @ weight.reshape(1, -1).astype(jnp.float32).T
            + bias.reshape(1).astype(jnp.float32))


if __name__ == "__main__":
    hidden_size = 32
    batch = 8

    key = jax.random.PRNGKey(0)
    k_x, k_w, k_b, k_x2 = jax.random.split(key, 4)

    # Deterministic synthetic parameters (shapes from nn.Linear(hidden_size, 1)).
    weight = jax.random.normal(k_w, (1, hidden_size), dtype=jnp.float32) * 0.02
    bias = jax.random.normal(k_b, (1,), dtype=jnp.float32) * 0.02
    features = jax.random.normal(k_x, (batch, hidden_size), dtype=jnp.float32)

    # 1) Toy shape through the Pallas path (force past the XLA fallback).
    out = sentence_scorer(features, weight, bias, force_pallas=True)
    jax.block_until_ready(out)
    ref = sentence_scorer_reference(features, weight, bias)
    assert out.shape == (batch, 1)
    assert jnp.allclose(out, ref, atol=1e-5, rtol=1e-5)

    # Toy shape through the default dispatch (XLA fallback) must agree too.
    out_xla = sentence_scorer(features, weight, bias)
    assert jnp.allclose(out_xla, ref, atol=1e-5, rtol=1e-5)

    # 2) Larger case: multi-tile grid, ragged tail block, chunked MAC (H=1024).
    big_batch, big_hidden = 1056, 1024
    weight_big = jax.random.normal(k_w, (1, big_hidden), dtype=jnp.float32) * 0.02
    features_big = jax.random.normal(k_x2, (big_batch, big_hidden),
                                     dtype=jnp.float32)
    out_big = sentence_scorer(features_big, weight_big, bias)
    jax.block_until_ready(out_big)
    ref_big = sentence_scorer_reference(features_big, weight_big, bias)
    assert out_big.shape == (big_batch, 1)
    assert jnp.allclose(out_big, ref_big, atol=1e-4, rtol=1e-4)

    # 3) bf16 features (upcast to f32 inside the kernel, half the HBM bytes).
    features_bf16 = features_big.astype(jnp.bfloat16)
    out_bf16 = sentence_scorer(features_bf16, weight_big, bias)
    jax.block_until_ready(out_bf16)
    ref_bf16 = sentence_scorer_reference(features_bf16, weight_big, bias)
    assert out_bf16.shape == (big_batch, 1)
    assert jnp.allclose(out_bf16, ref_bf16, atol=1e-4, rtol=1e-4)

    print("KERNEL_OK")
</pallas_src>

<mosaic_0001>
module attributes {stable_mosaic.version = 11 : i64} {
  func.func @_scorer_kernel(%arg0: i32, %arg1: memref<8x32xf32, #tpu.memory_space<vmem>>, %arg2: memref<1x32xf32, #tpu.memory_space<vmem>>, %arg3: memref<1xf32, #tpu.memory_space<smem>>, %arg4: memref<8x1xf32, #tpu.memory_space<vmem>>) attributes {dimension_semantics = [#tpu.dimension_semantics<parallel>], iteration_bounds = array<i64: 1>, scalar_prefetch = 0 : i64, scratch_operands = 0 : i64, tpu.core_type = #tpu.core_type<tc>, window_params = [{transform_indices = @transform_0, window_bounds = array<i64: 8, 32>}, {pipeline_mode = #tpu.pipeline_mode<synchronous>, transform_indices = @transform_1, window_bounds = array<i64: 1, 32>}, {transform_indices = @transform_2, window_bounds = array<i64: 1>}, {transform_indices = @transform_3, window_bounds = array<i64: 8, 1>}]} {
    %c0 = arith.constant 0 : index
    %c0_0 = arith.constant 0 : index
    %0 = vector.load %arg1[%c0, %c0_0] : memref<8x32xf32, #tpu.memory_space<vmem>>, vector<8x32xf32>
    %c0_1 = arith.constant 0 : index
    %c0_2 = arith.constant 0 : index
    %1 = vector.load %arg2[%c0_1, %c0_2] : memref<1x32xf32, #tpu.memory_space<vmem>>, vector<1x32xf32>
    %2 = vector.broadcast %1 : vector<1x32xf32> to vector<8x32xf32>
    %3 = arith.mulf %0, %2 : vector<8x32xf32>
    %cst = arith.constant dense<0.000000e+00> : vector<8xf32>
    %4 = vector.multi_reduction <add>, %3, %cst [1] : vector<8x32xf32> to vector<8xf32>
    %5 = vector.shape_cast %4 : vector<8xf32> to vector<8x1xf32>
    %c0_3 = arith.constant 0 : index
    %6 = memref.load %arg3[%c0_3] : memref<1xf32, #tpu.memory_space<smem>>
    %7 = vector.broadcast %6 : f32 to vector<8x1xf32>
    %8 = arith.addf %5, %7 : vector<8x1xf32>
    %c0_4 = arith.constant 0 : index
    %c0_5 = arith.constant 0 : index
    %9 = vector.load %arg4[%c0_4, %c0_5] : memref<8x1xf32, #tpu.memory_space<vmem>>, vector<8x1xf32>
    tpu.vector_store %arg4[%c0_4, %c0_5], %8 {strides = array<i32>} : memref<8x1xf32, #tpu.memory_space<vmem>>, vector<8x1xf32>,
    return
  }
  func.func @transform_0(%arg0: i32) -> (i32, i32) {
    %c0_i32 = arith.constant 0 : i32
    %c0_i32_0 = arith.constant 0 : i32
    return %arg0, %c0_i32 : i32, i32
  }
  func.func @transform_1(%arg0: i32) -> (i32, i32) {
    %c0_i32 = arith.constant 0 : i32
    %c0_i32_0 = arith.constant 0 : i32
    %c0_i32_1 = arith.constant 0 : i32
    return %c0_i32, %c0_i32_0 : i32, i32
  }
  func.func @transform_2(%arg0: i32) -> i32 {
    %c0_i32 = arith.constant 0 : i32
    %c0_i32_0 = arith.constant 0 : i32
    return %c0_i32 : i32
  }
  func.func @transform_3(%arg0: i32) -> (i32, i32) {
    %c0_i32 = arith.constant 0 : i32
    %c0_i32_0 = arith.constant 0 : i32
    return %arg0, %c0_i32 : i32, i32
  }
}

</mosaic_0001>

<llo_original>
// kernel: tpu_custom_call.1
$region0: #{tpu_custom_call.1}
  #allocation0 [shape = 'u32[]', space=smem, size = 0x4, offset = 0x4, fixed_abs, tag = 'smem constant byte address 0x4 - core index']
  #allocation1 [shape = 'u32[144,128]{1,0:T(1,128)}', space=vmem, size = 0x12000, scoped, tag = 'internal scratch']
  #allocation2 [shape = 'f32[1]{0:T(128)S(6)}', space=smem, size = 0x200, scoped, tag = 'scoped memory for tpu_custom_call.1']
  %s0 = inlined_call_operand.hbm [shape: f32[8,32], index: 0, kind: input, shape index: {}]
  %s1 = inlined_call_operand.vmem [shape: f32[1,32], index: 1, kind: input, shape index: {}]
  %s2 = inlined_call_operand.<no memory space> [shape: f32[1], index: 2, kind: input, shape index: {}]
  %s3 = inlined_call_operand.vmem [shape: f32[8,1], index: 3, kind: output, shape index: {}]
  %s4 = sld [smem:[#allocation0]]
  $region26: #{tpu_custom_call.1} parent=0
    _
  %s6 = ssub.s32 1, %s4
  %s7 = scalar_select 0, %s6, %s4
  %8 = sst [smem:[#allocation2]] %s2
  $region1: #{tpu_custom_call.1} parent=0
    #allocation3 [shape = 'u8[4096]{0}', space=vmem, size = 0x1000, scoped, tag = 'input window, operand 0, single buffered']
    #allocation4 [shape = 's32[1]{0}', space=sflag, size = 0x4, scoped, tag = 'scoped memory for tpu_custom_call.1']
    %9 = vsyncpa [#allocation4], 0
    // Predicated region
    $region2: #{tpu_custom_call.1} parent=1 // pred_check
      _
    $region3: #{tpu_custom_call.1} parent=1 // pred_check_branch
      %11 = sbr.rel (0) target = $region5
    $region4: #{tpu_custom_call.1} parent=1 // pred_region
      %s13 = ssub.s32 128, 128
      %14 = vsyncadd [#allocation4], %s13
      %s16 = sshll.u32 [#allocation3], 4
      %s17 = int_to_ptr.vmem [resolvable:$true] %s16
      %19 = dma.hbm_to_vmem [thread:$0]  %s0, 128, %s17, [#allocation4]
    $region5: #{tpu_custom_call.1} parent=1 // pred_fallthru
      _
    // Predicated region
    $region6: #{tpu_custom_call.1} parent=1 // pred_check
      _
    $region7: #{tpu_custom_call.1} parent=1 // pred_check_branch
      %21 = sbr.rel (0) target = $region9
    $region8: #{tpu_custom_call.1} parent=1 // pred_region
      _
    $region9: #{tpu_custom_call.1} parent=1 // pred_fallthru
      _
    // Predicated region
    $region10: #{tpu_custom_call.1} parent=1 // pred_check
      _
    $region11: #{tpu_custom_call.1} parent=1 // pred_check_branch
      %23 = sbr.rel (0) target = $region13
    $region12: #{tpu_custom_call.1} parent=1 // pred_region
      _
    $region13: #{tpu_custom_call.1} parent=1 // pred_fallthru
      _
    // Predicated region
    $region14: #{tpu_custom_call.1} parent=1 // pred_check
      _
    $region15: #{tpu_custom_call.1} parent=1 // pred_check_branch
      %25 = sbr.rel (0) target = $region17
    $region16: #{tpu_custom_call.1} parent=1 // pred_region
      %26 = dma.done [#allocation4], 128
    $region17: #{tpu_custom_call.1} parent=1 // pred_fallthru
      _
    %v27 = vld [vmem:[#allocation3] sm:$0xff]
    %v28 = vld [vmem:[%s1] sm:$0x1]
    %v30 = vlaneseq
    %v31 = vshrl.u32 %v30, 7
    %v32 = vsub.s32 0, %v31
    %v33 = vrot.slane %v28, %v32
    %v35 = vmul.f32 %v27, %v33
    %vm36 = vcmask 261120
    %v37 = vsel %vm36, %v35, 0.0
    %38 = vadd.xlane.f32.xlu0 %v37
    %v39 = vpop.xlane.xlu0 %38
    %s40 = sld [smem:[#allocation2]]
    %v41 = vstv %s40
    %v42 = vadd.f32 %v39, %v41
    %vm43 = vcmask 7168
    %44 = vst.msk [vmem:[%s3] sm:$0xff] %vm43, %v42
    // Predicated region
    $region18: #{tpu_custom_call.1} parent=1 // pred_check
      _
    $region19: #{tpu_custom_call.1} parent=1 // pred_check_branch
      %46 = sbr.rel (0) target = $region21
    $region20: #{tpu_custom_call.1} parent=1 // pred_region
      _
    $region21: #{tpu_custom_call.1} parent=1 // pred_fallthru
      _
    // Predicated region
    $region22: #{tpu_custom_call.1} parent=1 // pred_check
      _
    $region23: #{tpu_custom_call.1} parent=1 // pred_check_branch
      %48 = sbr.rel (0) target = $region25
    $region24: #{tpu_custom_call.1} parent=1 // pred_region
      _
    $region25: #{tpu_custom_call.1} parent=1 // pred_fallthru
      _
    %49 = vsyncpa [#allocation4], 1

</llo_original>
